<compile_context>
chip_gen: v7x
topology: tpu7x:2x2x1
jax: 0.10.0
libtpu: 0.0.40
codegen_flags: <defaults>
</compile_context>

<pallas_src>
import jax
import jax.numpy as jnp
from jax.experimental import pallas as pl
from jax.experimental.pallas import tpu as pltpu


# ----------------------------------------------------------------------------
# Kernels
# ----------------------------------------------------------------------------
def _conv1d_kernel_single_k(x_ref, w_ref, b_ref, o_ref):
    # K fits in one block: no accumulator scratch, write the result directly.
    o_ref[...] = (
        jnp.dot(x_ref[...], w_ref[...], preferred_element_type=jnp.float32)
        + b_ref[...].astype(jnp.float32)
    ).astype(o_ref.dtype)


def _conv1d_kernel_tiled_k(x_ref, w_ref, b_ref, o_ref, acc_ref):
    # Grid = (outer, inner, k); k is the reduction axis (innermost).
    k = pl.program_id(2)
    partial = jnp.dot(x_ref[...], w_ref[...], preferred_element_type=jnp.float32)

    @pl.when(k == 0)
    def _first():
        # Overwrite instead of zero-init + add: saves a full f32 tile store.
        acc_ref[...] = partial

    @pl.when(k > 0)
    def _accumulate():
        acc_ref[...] += partial

    @pl.when(k == pl.num_programs(2) - 1)
    def _finalize():
        o_ref[...] = (
            acc_ref[...] + b_ref[...].astype(jnp.float32)
        ).astype(o_ref.dtype)


# ----------------------------------------------------------------------------
# Tile / VMEM helpers
# ----------------------------------------------------------------------------
def _vmem_capacity_bytes() -> int:
    try:
        return int(pltpu.get_tpu_info().vmem_capacity_bytes)
    except Exception:
        return 64 * 2**20  # conservative: v7x per-TensorCore VMEM


def _largest_aligned_divisor(dim: int, max_tile: int, align: int) -> int:
    """Largest multiple of `align` that exactly divides `dim`, capped at max_tile.

    Falls back to the full dim (if it fits) or an aligned max_tile (ragged last
    block -- correctness is preserved, only the last block is masked).
    """
    if dim <= max_tile:
        return dim
    t = (max_tile // align) * align
    while t >= align:
        if dim % t == 0:
            return t
        t -= align
    return max((max_tile // align) * align, align)


def _pick_tile_k(nx: int, max_tk: int) -> int:
    """Reduction tile MUST divide nx exactly (OOB reads along K would corrupt
    the accumulator). Returns nx (un-tiled) if no aligned exact divisor fits."""
    if nx <= max_tk:
        return nx
    t = (max_tk // 128) * 128
    while t >= 128:
        if nx % t == 0:
            return t
        t -= 128
    return nx


def _vmem_estimate(tm, tn, tk, k_tiled, in_itemsize, out_itemsize):
    return (
        2 * (tm * tk + tk * tn) * in_itemsize  # double-buffered x / W tiles
        + 2 * tm * tn * out_itemsize           # double-buffered output tile
        + (tm * tn * 4 if k_tiled else 0)      # f32 accumulator (K tiled only)
        + 2 * tn * 4                           # bias tile
    )


# ----------------------------------------------------------------------------
# Wrapper
# ----------------------------------------------------------------------------
def conv1d(
    x,
    weight,
    bias,
    *,
    tile_m=512,
    tile_n=2048,
    tile_k=2048,
    compute_dtype=jnp.bfloat16,
    out_dtype=None,
):
    """GPT-2 Conv1D forward: reshape (..., nx) -> (-1, nx), matmul + bias, reshape back."""
    nx, nf = weight.shape
    lead = x.shape[:-1]
    out_dtype = x.dtype if out_dtype is None else jnp.dtype(out_dtype)

    x2d = x.reshape(-1, nx)
    m = x2d.shape[0]

    # MXU in bf16 by default (f32 accumulation in-kernel); cast back on store.
    if compute_dtype is not None:
        x2d = x2d.astype(compute_dtype)
        w = weight.astype(compute_dtype)
    else:
        w = weight
    b2d = bias.reshape(1, nf).astype(jnp.float32)

    in_itemsize = jnp.dtype(x2d.dtype).itemsize
    out_itemsize = jnp.dtype(out_dtype).itemsize

    # --- tile selection -------------------------------------------------------
    # M tile: multiple of 8 (sublane) unless the full extent is smaller.
    if tile_m >= m:
        tile_m = m
    else:
        tile_m = max((tile_m // 8) * 8, 8)
    # N tile: largest 128-multiple that exactly divides nf (no ragged last block).
    tile_n = _largest_aligned_divisor(nf, tile_n, 128)
    # K tile: exact divisor of nx only (un-tiled for every real GPT-2 layer).
    tile_k = _pick_tile_k(nx, tile_k)

    # --- generation-aware VMEM budget ----------------------------------------
    vmem_cap = _vmem_capacity_bytes()
    budget = int(0.70 * vmem_cap)
    while True:
        k_blocks = max(nx // tile_k, 1)
        est = _vmem_estimate(
            tile_m, tile_n, tile_k, k_blocks > 1, in_itemsize, out_itemsize
        )
        if est <= budget:
            break
        # Prefer tiling K (keeps lane-dense stores + W reuse across M blocks) ...
        new_tk = _pick_tile_k(nx, max(tile_k // 2, 128))
        if new_tk < tile_k:
            tile_k = new_tk
            continue
        # ... then shrink N ...
        new_tn = _largest_aligned_divisor(nf, max(tile_n // 2, 128), 128)
        if new_tn < tile_n:
            tile_n = new_tn
            continue
        # ... then M.
        if tile_m > 64:
            tile_m = max(tile_m // 2, 64)
            continue
        break  # give up shrinking; rely on the vmem limit headroom below

    m_blocks = pl.cdiv(m, tile_m)
    n_blocks = pl.cdiv(nf, tile_n)
    k_blocks = max(nx // tile_k, 1)
    k_tiled = k_blocks > 1

    # v7x megacore: make sure the leading parallel axis has >= 2 blocks when
    # possible (e.g. c_proj has nf=768 -> single N block -> put M first).
    m_leading = (n_blocks == 1) and (m_blocks > 1)
    if m_leading:
        grid = (m_blocks, n_blocks, k_blocks)
        x_map = lambda i, j, k: (i, k)
        w_map = lambda i, j, k: (k, j)
        b_map = lambda i, j, k: (0, j)
        o_map = lambda i, j, k: (i, j)
    else:
        # N outer: W / bias tiles stay resident across M blocks when K is un-tiled.
        grid = (n_blocks, m_blocks, k_blocks)
        x_map = lambda j, i, k: (i, k)
        w_map = lambda j, i, k: (k, j)
        b_map = lambda j, i, k: (0, j)
        o_map = lambda j, i, k: (i, j)

    est = _vmem_estimate(tile_m, tile_n, tile_k, k_tiled, in_itemsize, out_itemsize)
    vmem_limit = int(min(max(int(1.5 * est), 32 * 2**20), int(0.85 * vmem_cap)))

    # Accurate HBM-traffic hint: x / W get re-streamed depending on loop order.
    if not k_tiled:
        x_passes, w_passes = (1, m_blocks) if m_leading else (n_blocks, 1)
    else:
        x_passes, w_passes = n_blocks, m_blocks
    cost = pl.CostEstimate(
        flops=2 * m * nx * nf,
        transcendentals=0,
        bytes_accessed=(
            x_passes * m * nx * in_itemsize
            + w_passes * nx * nf * in_itemsize
            + nf * 4
            + m * nf * out_itemsize
        ),
    )

    in_specs = [
        pl.BlockSpec((tile_m, tile_k), x_map),  # x
        pl.BlockSpec((tile_k, tile_n), w_map),  # W
        pl.BlockSpec((1, tile_n), b_map),       # bias
    ]
    out_spec = pl.BlockSpec((tile_m, tile_n), o_map)

    if k_tiled:
        kernel = _conv1d_kernel_tiled_k
        scratch_shapes = [pltpu.VMEM((tile_m, tile_n), jnp.float32)]
    else:
        kernel = _conv1d_kernel_single_k
        scratch_shapes = []

    out2d = pl.pallas_call(
        kernel,
        out_shape=jax.ShapeDtypeStruct((m, nf), out_dtype),
        grid_spec=pltpu.PrefetchScalarGridSpec(
            num_scalar_prefetch=0,
            grid=grid,
            in_specs=in_specs,
            out_specs=out_spec,
            scratch_shapes=scratch_shapes,
        ),
        compiler_params=pltpu.CompilerParams(
            dimension_semantics=("parallel", "parallel", "arbitrary"),
            vmem_limit_bytes=vmem_limit,
        ),
        cost_estimate=cost,
    )(x2d, w, b2d)

    return out2d.reshape(*lead, nf)


def conv1d_ref(x, weight, bias):
    return jnp.einsum("...k,kn->...n", x, weight) + bias


if __name__ == "__main__":
    # Module params: nf output features, nx input features.
    batch, seq, nx, nf = 2, 8, 32, 64

    key = jax.random.PRNGKey(0)
    kx, kw = jax.random.split(key)

    # Deterministic parameter init mirroring nn.init.normal_(std=0.02) and zero bias.
    weight = 0.02 * jax.random.normal(kw, (nx, nf), dtype=jnp.float32)
    bias = jnp.zeros((nf,), dtype=jnp.float32)
    x = jax.random.normal(kx, (batch, seq, nx), dtype=jnp.float32)

    ref = conv1d_ref(x, weight, bias)

    # Default bf16 MXU path (f32 accumulation): relaxed tolerance vs f32 reference.
    out = jax.block_until_ready(conv1d(x, weight, bias))
    assert out.shape == (batch, seq, nf)
    assert out.dtype == x.dtype
    assert jnp.allclose(out, ref, atol=1e-2, rtol=1e-2)

    # Full-precision path: tight tolerance.
    out_f32 = jax.block_until_ready(conv1d(x, weight, bias, compute_dtype=None))
    assert jnp.allclose(out_f32, ref, atol=1e-5, rtol=1e-5)

    # bf16 output dtype path (model running in bf16): halves output HBM writes.
    out_bf16 = jax.block_until_ready(
        conv1d(x, weight, bias, out_dtype=jnp.bfloat16)
    )
    assert out_bf16.dtype == jnp.bfloat16
    assert jnp.allclose(out_bf16.astype(jnp.float32), ref, atol=3e-2, rtol=3e-2)

    print("KERNEL_OK")
</pallas_src>

<mosaic_0001>
module attributes {stable_mosaic.version = 11 : i64} {
  func.func @_conv1d_kernel_single_k(%arg0: i32, %arg1: i32, %arg2: i32, %arg3: memref<16x32xbf16, #tpu.memory_space<vmem>>, %arg4: memref<32x64xbf16, #tpu.memory_space<vmem>>, %arg5: memref<1x64xf32, #tpu.memory_space<vmem>>, %arg6: memref<16x64xf32, #tpu.memory_space<vmem>>) attributes {dimension_semantics = [#tpu.dimension_semantics<parallel>, #tpu.dimension_semantics<parallel>, #tpu.dimension_semantics<arbitrary>], iteration_bounds = array<i64: 1, 1, 1>, scalar_prefetch = 0 : i64, scratch_operands = 0 : i64, tpu.core_type = #tpu.core_type<tc>, window_params = [{transform_indices = @transform_0, window_bounds = array<i64: 16, 32>}, {transform_indices = @transform_1, window_bounds = array<i64: 32, 64>}, {transform_indices = @transform_2, window_bounds = array<i64: 1, 64>}, {transform_indices = @transform_3, window_bounds = array<i64: 16, 64>}]} {
    %c0 = arith.constant 0 : index
    %c0_0 = arith.constant 0 : index
    %0 = vector.load %arg3[%c0, %c0_0] : memref<16x32xbf16, #tpu.memory_space<vmem>>, vector<16x32xbf16>
    %c0_1 = arith.constant 0 : index
    %c0_2 = arith.constant 0 : index
    %1 = vector.load %arg4[%c0_1, %c0_2] : memref<32x64xbf16, #tpu.memory_space<vmem>>, vector<32x64xbf16>
    %cst = arith.constant dense<0.000000e+00> : vector<16x64xf32>
    %2 = tpu.matmul %0, %1, %cst {dimension_numbers = #tpu.dot_dimension_numbers<[1], [0], [0], [1], [0, 0, 1, 1], [], []>} : vector<16x32xbf16>, vector<32x64xbf16>, vector<16x64xf32> -> vector<16x64xf32>
    %c0_3 = arith.constant 0 : index
    %c0_4 = arith.constant 0 : index
    %3 = vector.load %arg5[%c0_3, %c0_4] : memref<1x64xf32, #tpu.memory_space<vmem>>, vector<1x64xf32>
    %4 = vector.broadcast %3 : vector<1x64xf32> to vector<16x64xf32>
    %5 = arith.addf %2, %4 : vector<16x64xf32>
    %c0_5 = arith.constant 0 : index
    %c0_6 = arith.constant 0 : index
    %6 = vector.load %arg6[%c0_5, %c0_6] : memref<16x64xf32, #tpu.memory_space<vmem>>, vector<16x64xf32>
    tpu.vector_store %arg6[%c0_5, %c0_6], %5 {strides = array<i32>} : memref<16x64xf32, #tpu.memory_space<vmem>>, vector<16x64xf32>,
    return
  }
  func.func @transform_0(%arg0: i32, %arg1: i32, %arg2: i32) -> (i32, i32) {
    %c0_i32 = arith.constant 0 : i32
    return %arg1, %arg2 : i32, i32
  }
  func.func @transform_1(%arg0: i32, %arg1: i32, %arg2: i32) -> (i32, i32) {
    %c0_i32 = arith.constant 0 : i32
    return %arg2, %arg0 : i32, i32
  }
  func.func @transform_2(%arg0: i32, %arg1: i32, %arg2: i32) -> (i32, i32) {
    %c0_i32 = arith.constant 0 : i32
    %c0_i32_0 = arith.constant 0 : i32
    return %c0_i32, %arg0 : i32, i32
  }
  func.func @transform_3(%arg0: i32, %arg1: i32, %arg2: i32) -> (i32, i32) {
    %c0_i32 = arith.constant 0 : i32
    return %arg1, %arg0 : i32, i32
  }
}

</mosaic_0001>

<llo_original>
// kernel: tpu_custom_call.1
$region0: #{tpu_custom_call.1}
  #allocation0 [shape = 'u32[]', space=smem, size = 0x4, offset = 0x4, fixed_abs, tag = 'smem constant byte address 0x4 - core index']
  #allocation1 [shape = 'u32[144,128]{1,0:T(1,128)}', space=vmem, size = 0x12000, scoped, tag = 'internal scratch']
  %s0 = inlined_call_operand.hbm [shape: bf16[16,32], index: 0, kind: input, shape index: {}]
  %s1 = inlined_call_operand.hbm [shape: bf16[32,64], index: 1, kind: input, shape index: {}]
  %s2 = inlined_call_operand.vmem [shape: f32[1,64], index: 2, kind: input, shape index: {}]
  %s3 = inlined_call_operand.hbm [shape: f32[16,64], index: 3, kind: output, shape index: {}]
  %s4 = sld [smem:[#allocation0]]
  $region30: #{tpu_custom_call.1} parent=0
    _
  %s6 = ssub.s32 1, %s4
  %s7 = scalar_select 0, %s6, %s4
  $region1: #{tpu_custom_call.1} parent=0
    #allocation2 [shape = 'u8[4096]{0}', space=vmem, size = 0x1000, scoped, tag = 'input window, operand 0, single buffered']
    #allocation3 [shape = 's32[1]{0}', space=sflag, size = 0x4, scoped, tag = 'scoped memory for tpu_custom_call.1']
    #allocation4 [shape = 's32[1]{0}', space=sflag, size = 0x4, scoped, tag = 'scoped memory for tpu_custom_call.1']
    #allocation5 [shape = 'u8[8192]{0}', space=vmem, size = 0x2000, scoped, tag = 'input window, operand 1, single buffered']
    #allocation6 [shape = 's32[1]{0}', space=sflag, size = 0x4, scoped, tag = 'scoped memory for tpu_custom_call.1']
    #allocation7 [shape = 'u8[8192]{0}', space=vmem, size = 0x2000, scoped, tag = 'output window, operand 0, single buffered']
    %8 = vsyncpa [#allocation3], 0
    %9 = vsyncpa [#allocation6], 0
    %10 = vsyncpa [#allocation4], 0
    // Predicated region
    $region2: #{tpu_custom_call.1} parent=1 // pred_check
      _
    $region3: #{tpu_custom_call.1} parent=1 // pred_check_branch
      %12 = sbr.rel (0) target = $region5
    $region4: #{tpu_custom_call.1} parent=1 // pred_region
      %s14 = ssub.s32 128, 128
      %15 = vsyncadd [#allocation3], %s14
      %s16 = sshll.u32 [#allocation2], 4
      %s17 = int_to_ptr.vmem [resolvable:$true] %s16
      %22 = dma.hbm_to_vmem [thread:$0]  %s0, 128, %s17, [#allocation3], 64, 64, 4
    $region5: #{tpu_custom_call.1} parent=1 // pred_fallthru
      _
    // Predicated region
    $region6: #{tpu_custom_call.1} parent=1 // pred_check
      _
    $region7: #{tpu_custom_call.1} parent=1 // pred_check_branch
      %24 = sbr.rel (0) target = $region9
    $region8: #{tpu_custom_call.1} parent=1 // pred_region
      %s26 = ssub.s32 256, 256
      %27 = vsyncadd [#allocation6], %s26
      %s28 = sshll.u32 [#allocation5], 4
      %s29 = int_to_ptr.vmem [resolvable:$true] %s28
      %34 = dma.hbm_to_vmem [thread:$0]  %s1, 256, %s29, [#allocation6], 64, 64, 4
    $region9: #{tpu_custom_call.1} parent=1 // pred_fallthru
      _
    // Predicated region
    $region10: #{tpu_custom_call.1} parent=1 // pred_check
      _
    $region11: #{tpu_custom_call.1} parent=1 // pred_check_branch
      %36 = sbr.rel (0) target = $region13
    $region12: #{tpu_custom_call.1} parent=1 // pred_region
      _
    $region13: #{tpu_custom_call.1} parent=1 // pred_fallthru
      _
    // Predicated region
    $region14: #{tpu_custom_call.1} parent=1 // pred_check
      _
    $region15: #{tpu_custom_call.1} parent=1 // pred_check_branch
      %38 = sbr.rel (0) target = $region17
    $region16: #{tpu_custom_call.1} parent=1 // pred_region
      %39 = dma.done [#allocation3], 128
    $region17: #{tpu_custom_call.1} parent=1 // pred_fallthru
      _
    // Predicated region
    $region18: #{tpu_custom_call.1} parent=1 // pred_check
      _
    $region19: #{tpu_custom_call.1} parent=1 // pred_check_branch
      %41 = sbr.rel (0) target = $region21
    $region20: #{tpu_custom_call.1} parent=1 // pred_region
      %42 = dma.done [#allocation6], 256
    $region21: #{tpu_custom_call.1} parent=1 // pred_fallthru
      _
    %v44 = vld [vmem:[#allocation2] sm:$0xf]
    %v45 = vld [vmem:[#allocation2 + $0x4] sm:$0xf]
    %v46 = vld [vmem:[#allocation5] sm:$0xf]
    %v47 = vld [vmem:[#allocation5 + $0x4] sm:$0xf]
    %v48 = vld [vmem:[#allocation5 + $0x8] sm:$0xf]
    %v49 = vld [vmem:[#allocation5 + $0xc] sm:$0xf]
    %v50 = vld [vmem:[%s2] sm:$0x1]
    %v52 = vlaneseq
    %v53 = vshrl.u32 %v52, 7
    %v54 = vsub.s32 0, %v53
    %v55 = vrot.slane %v50, %v54
    %v59 = vunpack.c.l.b16 %v44
    %v60 = vunpack.c.l.b16 %v45
    %v61 = vpack.c.b16 %v60, %v59
    %v66 = vunpack.c.l.b16 %v46
    %v67 = vunpack.c.l.b16 %v47
    %v68 = vunpack.c.l.b16 %v48
    %v69 = vunpack.c.l.b16 %v49
    %v70 = vpack.c.b16 %v67, %v66
    %v71 = vpack.c.b16 %v69, %v68
    %vm74 = vcmask 261120
    %v76 = vsel %vm74, %v61, 0
    %78 = vmatprep.subr.bf16.mxu0 0
    %79 = vmatpush1.bf16.msra.mxu0 %v70
    %80 = vmatprep.subr.bf16.mxu0 0
    %81 = vmatpush1.bf16.msra.mxu0 %v71
    %82 = vmatprep.subr.bf16.mxu0 0
    %83 = vmatpush1.bf16.msra.mxu0 0
    %84 = vmatprep.subr.bf16.mxu0 0
    %85 = vmatpush1.bf16.msra.mxu0 0
    %86 = vmatprep.subr.bf16.mxu0 0
    %87 = vmatpush1.bf16.msra.mxu0 0
    %88 = vmatprep.subr.bf16.mxu0 0
    %89 = vmatpush1.bf16.msra.mxu0 0
    %90 = vmatprep.subr.bf16.mxu0 0
    %91 = vmatpush1.bf16.msra.mxu0 0
    %92 = vmatprep.subr.bf16.mxu0 0
    %93 = vmatpush1.bf16.msra.mxu0 0
    %94 = vmatprep.subr.bf16.mxu0 0
    %95 = vmatpush1.bf16.msra.mxu0 0
    %96 = vmatprep.subr.bf16.mxu0 0
    %97 = vmatpush1.bf16.msra.mxu0 0
    %98 = vmatprep.subr.bf16.mxu0 0
    %99 = vmatpush1.bf16.msra.mxu0 0
    %100 = vmatprep.subr.bf16.mxu0 0
    %101 = vmatpush1.bf16.msra.mxu0 0
    %102 = vmatprep.subr.bf16.mxu0 0
    %103 = vmatpush1.bf16.msra.mxu0 0
    %104 = vmatprep.subr.bf16.mxu0 0
    %105 = vmatpush1.bf16.msra.mxu0 0
    %106 = vmatprep.subr.bf16.mxu0 0
    %107 = vmatpush1.bf16.msra.mxu0 0
    %108 = vmatprep.subr.bf16.mxu0 0
    %109 = vmatpush1.bf16.msra.mxu0 0
    %110 = vmatprep.mubr.bf16.mxu0 0
    %111 = vmatmul.mubr.bf16.gmra.mrb[0].mxu0 %v76
    %v112 = vpop.f32.mrb[0].mxu0
    %v113 = vadd.f32 %v55, %v112
    %v114 = vpop.f32.mrb[0].mxu0
    %v115 = vpop.f32.mrb[0].mxu0
    %v116 = vadd.f32 %v55, %v115
    %v117 = vpop.f32.mrb[0].mxu0
    %118 = vdwg.mxu0
    %vm119 = vcmask 523264
    %120 = vst.msk [vmem:[#allocation7] sm:$0xff] %vm119, %v113
    %121 = vst.msk [vmem:[#allocation7 + $0x8] sm:$0xff] %vm119, %v116
    // Predicated region
    $region22: #{tpu_custom_call.1} parent=1 // pred_check
      _
    $region23: #{tpu_custom_call.1} parent=1 // pred_check_branch
      %123 = sbr.rel (0) target = $region25
    $region24: #{tpu_custom_call.1} parent=1 // pred_region
      %s125 = ssub.s32 256, 256
      %126 = vsyncadd [#allocation4], %s125
      %s127 = sshll.u32 [#allocation7], 4
      %s128 = int_to_ptr.vmem [resolvable:$true] %s127
      %133 = dma.vmem_to_hbm [thread:$0]  %s128, 256, %s3, [#allocation4], 128, 128, 8
    $region25: #{tpu_custom_call.1} parent=1 // pred_fallthru
      _
    // Predicated region
    $region26: #{tpu_custom_call.1} parent=1 // pred_check
      _
    $region27: #{tpu_custom_call.1} parent=1 // pred_check_branch
      %135 = sbr.rel (0) target = $region29
    $region28: #{tpu_custom_call.1} parent=1 // pred_region
      %136 = dma.done [#allocation4], 256
    $region29: #{tpu_custom_call.1} parent=1 // pred_fallthru
      _
    %137 = vsyncpa [#allocation3], 1
    %138 = vsyncpa [#allocation6], 1
    %139 = vsyncpa [#allocation4], 1

</llo_original>
